<compile_context>
chip_gen: v6e
topology: v6e:2x2x1
jax: 0.10.0
libtpu: 0.0.40
codegen_flags: <defaults>
</compile_context>

<pallas_src>
import jax
import jax.numpy as jnp
from jax.experimental import pallas as pl
from jax.experimental.pallas import tpu as pltpu

DIM_S = 4
IN_FEATURES = (DIM_S + 1) * 2   # 10
OUT_FEATURES = DIM_S * 2        # 8

_DEFAULT_MAX_TILE = 8192        # lanes per block; safe on v5e/v6e/v7x VMEM


def _mixer_kernel(w_ref, x_ref, o_ref):
    # One N-tile: Y = W @ X on the MXU, accumulate in f32.
    o_ref[...] = jnp.dot(
        w_ref[...], x_ref[...], preferred_element_type=jnp.float32
    ).astype(o_ref.dtype)


def mixer_forward(x, w, *, max_tile=_DEFAULT_MAX_TILE):
    """Pallas implementation of Mixer.forward.

    x : any array with x.size % IN_FEATURES == 0 (torch reshapes it to (1,10,-1))
    w : (OUT_FEATURES, IN_FEATURES) linear weight (torch nn.Linear layout)
    returns: (DIM_S, 2, N) where N = x.size // IN_FEATURES
    """
    assert max_tile % 128 == 0, "tile must be a multiple of 128 lanes"
    x2d = x.reshape(IN_FEATURES, -1)          # == torch reshape(1, 10, -1)
    n = x2d.shape[1]

    # Lane-dense tiling: TN is a multiple of 128, capped at max_tile.
    tn = min(max_tile, pl.cdiv(n, 128) * 128)
    n_pad = pl.cdiv(n, tn) * tn               # full blocks only
    if n_pad != n:
        x2d = jnp.pad(x2d, ((0, 0), (0, n_pad - n)))

    itemsize = jnp.dtype(x.dtype).itemsize
    cost = pl.CostEstimate(
        flops=2 * OUT_FEATURES * IN_FEATURES * n_pad,
        transcendentals=0,
        bytes_accessed=(IN_FEATURES + OUT_FEATURES) * n_pad * itemsize
        + OUT_FEATURES * IN_FEATURES * jnp.dtype(w.dtype).itemsize,
    )

    y = pl.pallas_call(
        _mixer_kernel,
        out_shape=jax.ShapeDtypeStruct((OUT_FEATURES, n_pad), x.dtype),
        grid=(n_pad // tn,),
        in_specs=[
            # W: 320 B, constant index_map -> fetched once, stays resident.
            pl.BlockSpec((OUT_FEATURES, IN_FEATURES), lambda i: (0, 0)),
            # X: one (10, TN) lane tile per grid step (auto double-buffered).
            pl.BlockSpec((IN_FEATURES, tn), lambda i: (0, i)),
        ],
        out_specs=pl.BlockSpec((OUT_FEATURES, tn), lambda i: (0, i)),
        compiler_params=pltpu.CompilerParams(
            # No reduction axis: every N tile is independent -> shard the grid
            # across both TensorCores on v7x (no-op on v5e/v6e).
            dimension_semantics=("parallel",),
        ),
        cost_estimate=cost,
    )(w, x2d)

    y = y[:, :n]                               # drop lane padding
    return y.reshape(DIM_S, 2, n)


if __name__ == "__main__":
    key = jax.random.PRNGKey(0)
    k_w, k_x = jax.random.split(key)

    # Deterministic synthetic weight (torch checkpoint not available in-script).
    # TODO(synk): real weights come from 'model/mixer_val.ckpt'; not loadable here.
    w = jax.random.normal(k_w, (OUT_FEATURES, IN_FEATURES), dtype=jnp.float32) * 0.1

    # Example input: (dim_s + 1, 2, N) with N = 300 (not a multiple of 128, so
    # the pad-and-slice path is exercised too).
    N = 300
    x = jax.random.normal(k_x, (DIM_S + 1, 2, N), dtype=jnp.float32)

    # Reference: same math in plain JAX, mirrors the torch forward.
    x2d_ref = x.reshape(IN_FEATURES, -1)
    ref = (w @ x2d_ref).reshape(DIM_S, 2, -1)

    # 1) Default tiling (single full 384-lane block for this small N).
    out = jax.block_until_ready(mixer_forward(x, w))
    assert out.shape == (DIM_S, 2, N), out.shape
    assert jnp.allclose(out, ref, atol=1e-5, rtol=1e-5), "mismatch (default tile)"

    # 2) Force a multi-block grid (TN=128 -> 3 grid steps) to exercise the
    #    pipelined, resident-weight path that large N would take.
    out_tiled = jax.block_until_ready(mixer_forward(x, w, max_tile=128))
    assert out_tiled.shape == (DIM_S, 2, N), out_tiled.shape
    assert jnp.allclose(out_tiled, ref, atol=1e-5, rtol=1e-5), "mismatch (tiled)"

    print("KERNEL_OK")
</pallas_src>

<mosaic_0001>
module attributes {stable_mosaic.version = 11 : i64} {
  func.func @_mixer_kernel(%arg0: i32, %arg1: memref<8x10xf32, #tpu.memory_space<vmem>>, %arg2: memref<10x384xf32, #tpu.memory_space<vmem>>, %arg3: memref<8x384xf32, #tpu.memory_space<vmem>>) attributes {dimension_semantics = [#tpu.dimension_semantics<parallel>], iteration_bounds = array<i64: 1>, scalar_prefetch = 0 : i64, scratch_operands = 0 : i64, tpu.core_type = #tpu.core_type<tc>, window_params = [{pipeline_mode = #tpu.pipeline_mode<synchronous>, transform_indices = @transform_0, window_bounds = array<i64: 8, 10>}, {transform_indices = @transform_1, window_bounds = array<i64: 10, 384>}, {transform_indices = @transform_2, window_bounds = array<i64: 8, 384>}]} {
    %c0 = arith.constant 0 : index
    %c0_0 = arith.constant 0 : index
    %0 = vector.load %arg1[%c0, %c0_0] : memref<8x10xf32, #tpu.memory_space<vmem>>, vector<8x10xf32>
    %c0_1 = arith.constant 0 : index
    %c0_2 = arith.constant 0 : index
    %1 = vector.load %arg2[%c0_1, %c0_2] : memref<10x384xf32, #tpu.memory_space<vmem>>, vector<10x384xf32>
    %cst = arith.constant dense<0.000000e+00> : vector<8x384xf32>
    %2 = tpu.matmul %0, %1, %cst {dimension_numbers = #tpu.dot_dimension_numbers<[1], [0], [0], [1], [0, 0, 1, 1], [], []>} : vector<8x10xf32>, vector<10x384xf32>, vector<8x384xf32> -> vector<8x384xf32>
    %c0_3 = arith.constant 0 : index
    %c0_4 = arith.constant 0 : index
    %3 = vector.load %arg3[%c0_3, %c0_4] : memref<8x384xf32, #tpu.memory_space<vmem>>, vector<8x384xf32>
    tpu.vector_store %arg3[%c0_3, %c0_4], %2 {strides = array<i32>} : memref<8x384xf32, #tpu.memory_space<vmem>>, vector<8x384xf32>,
    return
  }
  func.func @transform_0(%arg0: i32) -> (i32, i32) {
    %c0_i32 = arith.constant 0 : i32
    %c0_i32_0 = arith.constant 0 : i32
    %c0_i32_1 = arith.constant 0 : i32
    return %c0_i32, %c0_i32_0 : i32, i32
  }
  func.func @transform_1(%arg0: i32) -> (i32, i32) {
    %c0_i32 = arith.constant 0 : i32
    %c0_i32_0 = arith.constant 0 : i32
    return %c0_i32, %arg0 : i32, i32
  }
  func.func @transform_2(%arg0: i32) -> (i32, i32) {
    %c0_i32 = arith.constant 0 : i32
    %c0_i32_0 = arith.constant 0 : i32
    return %c0_i32, %arg0 : i32, i32
  }
}

</mosaic_0001>

<llo_original>
// kernel: tpu_custom_call.1
$region0: #{tpu_custom_call.1}
  #allocation0 [shape = 'u32[]', space=smem, size = 0x4, offset = 0x4, fixed_abs, tag = 'smem constant byte address 0x4 - core index']
  #allocation1 [shape = 'u32[144,128]{1,0:T(1,128)}', space=vmem, size = 0x12000, scoped, tag = 'internal scratch']
  %s0 = inlined_call_operand.hbm [shape: f32[8,10], index: 0, kind: input, shape index: {}]
  %s1 = inlined_call_operand.hbm [shape: f32[10,384], index: 1, kind: input, shape index: {}]
  %s2 = inlined_call_operand.hbm [shape: f32[8,384], index: 2, kind: output, shape index: {}]
  %s3 = sld [smem:[#allocation0]]
  $region26: #{tpu_custom_call.1} parent=0
    _
  %s5 = ssub.s32 1, %s3
  %s6 = scalar_select 0, %s5, %s3
  $region1: #{tpu_custom_call.1} parent=0
    #allocation2 [shape = 'u8[4096]{0}', space=vmem, size = 0x1000, scoped, tag = 'input window, operand 0, single buffered']
    #allocation3 [shape = 's32[1]{0}', space=sflag, size = 0x4, scoped, tag = 'scoped memory for tpu_custom_call.1']
    #allocation4 [shape = 's32[1]{0}', space=sflag, size = 0x4, scoped, tag = 'scoped memory for tpu_custom_call.1']
    #allocation5 [shape = 'u8[24576]{0}', space=vmem, size = 0x6000, scoped, tag = 'input window, operand 1, single buffered']
    #allocation6 [shape = 's32[1]{0}', space=sflag, size = 0x4, scoped, tag = 'scoped memory for tpu_custom_call.1']
    #allocation7 [shape = 'u8[12288]{0}', space=vmem, size = 0x3000, scoped, tag = 'output window, operand 0, single buffered']
    %7 = vsyncpa [#allocation3], 0
    %8 = vsyncpa [#allocation6], 0
    %9 = vsyncpa [#allocation4], 0
    // Predicated region
    $region2: #{tpu_custom_call.1} parent=1 // pred_check
      _
    $region3: #{tpu_custom_call.1} parent=1 // pred_check_branch
      %11 = sbr.rel (0) target = $region5
    $region4: #{tpu_custom_call.1} parent=1 // pred_region
      %s13 = ssub.s32 128, 128
      %14 = vsyncadd [#allocation3], %s13
      %s16 = sshll.u32 [#allocation2], 4
      %s17 = int_to_ptr.vmem [resolvable:$true] %s16
      %19 = dma.hbm_to_vmem [thread:$0]  %s0, 128, %s17, [#allocation3]
    $region5: #{tpu_custom_call.1} parent=1 // pred_fallthru
      _
    // Predicated region
    $region6: #{tpu_custom_call.1} parent=1 // pred_check
      _
    $region7: #{tpu_custom_call.1} parent=1 // pred_check_branch
      %21 = sbr.rel (0) target = $region9
    $region8: #{tpu_custom_call.1} parent=1 // pred_region
      %s23 = ssub.s32 768, 768
      %24 = vsyncadd [#allocation6], %s23
      %s25 = sshll.u32 [#allocation5], 4
      %s26 = int_to_ptr.vmem [resolvable:$true] %s25
      %31 = dma.hbm_to_vmem [thread:$0]  %s1, 768, %s26, [#allocation6], 384, 384, 24
    $region9: #{tpu_custom_call.1} parent=1 // pred_fallthru
      _
    // Predicated region
    $region10: #{tpu_custom_call.1} parent=1 // pred_check
      _
    $region11: #{tpu_custom_call.1} parent=1 // pred_check_branch
      %33 = sbr.rel (0) target = $region13
    $region12: #{tpu_custom_call.1} parent=1 // pred_region
      %34 = dma.done [#allocation3], 128
    $region13: #{tpu_custom_call.1} parent=1 // pred_fallthru
      _
    // Predicated region
    $region14: #{tpu_custom_call.1} parent=1 // pred_check
      _
    $region15: #{tpu_custom_call.1} parent=1 // pred_check_branch
      %36 = sbr.rel (0) target = $region17
    $region16: #{tpu_custom_call.1} parent=1 // pred_region
      %37 = dma.done [#allocation6], 768
    $region17: #{tpu_custom_call.1} parent=1 // pred_fallthru
      _
    %v38 = vld [vmem:[#allocation2] sm:$0xff]
    %v39 = vld [vmem:[#allocation5] sm:$0xff]
    %v40 = vld [vmem:[#allocation5 + $0x8] sm:$0xff]
    %v41 = vld [vmem:[#allocation5 + $0x10] sm:$0xff]
    %v42 = vld [vmem:[#allocation5 + $0x18] sm:$0x3]
    %v43 = vld [vmem:[#allocation5 + $0x20] sm:$0x3]
    %v44 = vld [vmem:[#allocation5 + $0x28] sm:$0x3]
    %vm45 = vcmask 80896
    %v47 = vsel %vm45, %v38, 0
    %vm49 = vcmask 1041408
    %v51 = vsel %vm49, %v42, 0
    %v54 = vsel %vm49, %v43, 0
    %v57 = vsel %vm49, %v44, 0
    %59 = vmatprep.subr.mxu0 0.0
    %60 = vmatpush1.msra.mxu0 0.0
    %61 = vmatprep.subr.mxu0 0.0
    %62 = vmatpush1.msra.mxu0 0.0
    %63 = vmatprep.subr.mxu0 0.0
    %64 = vmatpush1.msra.mxu0 0.0
    %65 = vmatprep.subr.mxu0 0.0
    %66 = vmatpush1.msra.mxu0 0.0
    %67 = vmatprep.subr.mxu0 0.0
    %68 = vmatpush1.msra.mxu0 0.0
    %69 = vmatprep.subr.mxu0 0.0
    %70 = vmatpush1.msra.mxu0 0.0
    %71 = vmatprep.subr.mxu0 0.0
    %72 = vmatpush1.msra.mxu0 0.0
    %73 = vmatprep.subr.mxu0 0.0
    %74 = vmatpush1.msra.mxu0 0.0
    %75 = vmatprep.subr.mxu0 0.0
    %76 = vmatpush1.msra.mxu0 0.0
    %77 = vmatprep.subr.mxu0 0.0
    %78 = vmatpush1.msra.mxu0 0.0
    %79 = vmatprep.subr.mxu0 0.0
    %80 = vmatpush1.msra.mxu0 0.0
    %81 = vmatprep.subr.mxu0 0.0
    %82 = vmatpush1.msra.mxu0 0.0
    %83 = vmatprep.subr.mxu0 0.0
    %84 = vmatpush1.msra.mxu0 0.0
    %85 = vmatprep.subr.mxu0 0.0
    %86 = vmatpush1.msra.mxu0 0.0
    %87 = vmatprep.subr.mxu0 %v54
    %88 = vmatpush1.msra.mxu0 %v51
    %89 = vmatprep.subr.mxu0 %v40
    %90 = vmatpush1.msra.mxu0 %v39
    %91 = vmatprep.subr.mxu0 0.0
    %92 = vmatpush2.msra.mxu0 0.0
    %93 = vmatprep.subr.mxu0 0.0
    %94 = vmatpush2.msra.mxu0 0.0
    %95 = vmatprep.subr.mxu0 0.0
    %96 = vmatpush2.msra.mxu0 0.0
    %97 = vmatprep.subr.mxu0 0.0
    %98 = vmatpush2.msra.mxu0 0.0
    %99 = vmatprep.subr.mxu0 0.0
    %100 = vmatpush2.msra.mxu0 0.0
    %101 = vmatprep.subr.mxu0 0.0
    %102 = vmatpush2.msra.mxu0 0.0
    %103 = vmatprep.subr.mxu0 0.0
    %104 = vmatpush2.msra.mxu0 0.0
    %105 = vmatprep.subr.mxu0 0.0
    %106 = vmatpush2.msra.mxu0 0.0
    %107 = vmatprep.subr.mxu0 0.0
    %108 = vmatpush2.msra.mxu0 0.0
    %109 = vmatprep.subr.mxu0 0.0
    %110 = vmatpush2.msra.mxu0 0.0
    %111 = vmatprep.subr.mxu0 0.0
    %112 = vmatpush2.msra.mxu0 0.0
    %113 = vmatprep.subr.mxu0 0.0
    %114 = vmatpush2.msra.mxu0 0.0
    %115 = vmatprep.subr.mxu0 0.0
    %116 = vmatpush2.msra.mxu0 0.0
    %117 = vmatprep.subr.mxu0 0.0
    %118 = vmatpush2.msra.mxu0 0.0
    %119 = vmatprep.subr.mxu0 0.0
    %120 = vmatpush2.msra.mxu0 0.0
    %121 = vmatprep.subr.mxu0 0.0
    %122 = vmatpush2.msra.mxu0 0.0
    %123 = vmatprep.mubr.f32.mxu0 0.0
    %124 = vmatmul.mubr.f32.gmra.mxu0 %v47
    %v125 = vpop.f32.mrf.mxu0
    %v126 = vadd.f32 0.0, %v125
    %v127 = vpop.f32.mrf.mxu0
    %v128 = vadd.f32 0.0, %v127
    %129 = vdwg.mxu0
    %130 = vmatprep.subr.mxu0 0.0
    %131 = vmatpush1.msra.mxu0 0.0
    %132 = vmatprep.subr.mxu0 0.0
    %133 = vmatpush1.msra.mxu0 0.0
    %134 = vmatprep.subr.mxu0 0.0
    %135 = vmatpush1.msra.mxu0 0.0
    %136 = vmatprep.subr.mxu0 0.0
    %137 = vmatpush1.msra.mxu0 0.0
    %138 = vmatprep.subr.mxu0 0.0
    %139 = vmatpush1.msra.mxu0 0.0
    %140 = vmatprep.subr.mxu0 0.0
    %141 = vmatpush1.msra.mxu0 0.0
    %142 = vmatprep.subr.mxu0 0.0
    %143 = vmatpush1.msra.mxu0 0.0
    %144 = vmatprep.subr.mxu0 0.0
    %145 = vmatpush1.msra.mxu0 0.0
    %146 = vmatprep.subr.mxu0 0.0
    %147 = vmatpush1.msra.mxu0 0.0
    %148 = vmatprep.subr.mxu0 0.0
    %149 = vmatpush1.msra.mxu0 0.0
    %150 = vmatprep.subr.mxu0 0.0
    %151 = vmatpush1.msra.mxu0 0.0
    %152 = vmatprep.subr.mxu0 0.0
    %153 = vmatpush1.msra.mxu0 0.0
    %154 = vmatprep.subr.mxu0 0.0
    %155 = vmatpush1.msra.mxu0 0.0
    %156 = vmatprep.subr.mxu0 0.0
    %157 = vmatpush1.msra.mxu0 0.0
    %158 = vmatprep.subr.mxu0 0.0
    %159 = vmatpush1.msra.mxu0 %v57
    %160 = vmatprep.subr.mxu0 0.0
    %161 = vmatpush1.msra.mxu0 %v41
    %162 = vmatprep.subr.mxu0 0.0
    %163 = vmatpush2.msra.mxu0 0.0
    %164 = vmatprep.subr.mxu0 0.0
    %165 = vmatpush2.msra.mxu0 0.0
    %166 = vmatprep.subr.mxu0 0.0
    %167 = vmatpush2.msra.mxu0 0.0
    %168 = vmatprep.subr.mxu0 0.0
    %169 = vmatpush2.msra.mxu0 0.0
    %170 = vmatprep.subr.mxu0 0.0
    %171 = vmatpush2.msra.mxu0 0.0
    %172 = vmatprep.subr.mxu0 0.0
    %173 = vmatpush2.msra.mxu0 0.0
    %174 = vmatprep.subr.mxu0 0.0
    %175 = vmatpush2.msra.mxu0 0.0
    %176 = vmatprep.subr.mxu0 0.0
    %177 = vmatpush2.msra.mxu0 0.0
    %178 = vmatprep.subr.mxu0 0.0
    %179 = vmatpush2.msra.mxu0 0.0
    %180 = vmatprep.subr.mxu0 0.0
    %181 = vmatpush2.msra.mxu0 0.0
    %182 = vmatprep.subr.mxu0 0.0
    %183 = vmatpush2.msra.mxu0 0.0
    %184 = vmatprep.subr.mxu0 0.0
    %185 = vmatpush2.msra.mxu0 0.0
    %186 = vmatprep.subr.mxu0 0.0
    %187 = vmatpush2.msra.mxu0 0.0
    %188 = vmatprep.subr.mxu0 0.0
    %189 = vmatpush2.msra.mxu0 0.0
    %190 = vmatprep.subr.mxu0 0.0
    %191 = vmatpush2.msra.mxu0 0.0
    %192 = vmatprep.subr.mxu0 0.0
    %193 = vmatpush2.msra.mxu0 0.0
    %194 = vmatprep.mubr.f32.mxu0 0.0
    %195 = vmatmul.mubr.f32.gmra.mxu0 %v47
    %v196 = vpop.f32.mrf.mxu0
    %v197 = vadd.f32 0.0, %v196
    %v198 = vpop.f32.mrf.mxu0
    %199 = vdwg.mxu0
    %200 = vst [vmem:[#allocation7] sm:$0xff] %v126
    %201 = vst [vmem:[#allocation7 + $0x8] sm:$0xff] %v128
    %202 = vst [vmem:[#allocation7 + $0x10] sm:$0xff] %v197
    // Predicated region
    $region18: #{tpu_custom_call.1} parent=1 // pred_check
      _
    $region19: #{tpu_custom_call.1} parent=1 // pred_check_branch
      %204 = sbr.rel (0) target = $region21
    $region20: #{tpu_custom_call.1} parent=1 // pred_region
      %s206 = ssub.s32 384, 384
      %207 = vsyncadd [#allocation4], %s206
      %s209 = sshll.u32 [#allocation7], 4
      %s210 = int_to_ptr.vmem [resolvable:$true] %s209
      %212 = dma.vmem_to_hbm [thread:$0]  %s210, 384, %s2, [#allocation4]
    $region21: #{tpu_custom_call.1} parent=1 // pred_fallthru
      _
    // Predicated region
    $region22: #{tpu_custom_call.1} parent=1 // pred_check
      _
    $region23: #{tpu_custom_call.1} parent=1 // pred_check_branch
      %214 = sbr.rel (0) target = $region25
    $region24: #{tpu_custom_call.1} parent=1 // pred_region
      %215 = dma.done [#allocation4], 384
    $region25: #{tpu_custom_call.1} parent=1 // pred_fallthru
      _
    %216 = vsyncpa [#allocation3], 1
    %217 = vsyncpa [#allocation6], 1
    %218 = vsyncpa [#allocation4], 1

</llo_original>
